<compile_context>
chip_gen: v5e
topology: v5e:2x2
jax: 0.10.0
libtpu: 0.0.40
codegen_flags: <defaults>
</compile_context>

<pallas_src>
import functools

import jax
import jax.numpy as jnp
from jax import lax
from jax.experimental import pallas as pl
from jax.experimental.pallas import tpu as pltpu


_MAX_COL_TILE = 2048   # lane-tile cap (multiple of 128)


def _round_up(x, m):
    return ((x + m - 1) // m) * m


def _static_int_pow(v, g):
    """v**g for a small non-negative Python int g via repeated multiplies (no EUP)."""
    result = None
    base = v
    while g > 0:
        if g & 1:
            result = base if result is None else result * base
        g >>= 1
        if g:
            base = base * base
    return jnp.ones_like(v) if result is None else result


def _vmem_budgets():
    """(wire_target_bytes, f32_block_cap_bytes, vmem_limit_bytes) per generation."""
    try:
        cap = pltpu.get_tpu_info().vmem_capacity_bytes
    except Exception:  # budgeting hint only; fall back to the roomy default
        cap = 128 << 20
    if cap <= (96 << 20):               # v7x-class: 64 MiB VMEM per TensorCore
        return (2 << 20, 4 << 20, 48 << 20)
    return (4 << 20, 4 << 20, 64 << 20)  # v5e / v6e: 128 MiB VMEM


def _focal_loss_tile_kernel(logits_ref, targets_ref, partial_ref, *,
                            alpha, gamma, true_rows, true_cols,
                            mask_rows, mask_cols, approx_recip):
    x = logits_ref[...].astype(jnp.float32)
    t = targets_ref[...].astype(jnp.float32)
    tr, tc = x.shape

    # One shared EUP exp feeds both the stable BCE term and the sigmoid.
    z = jnp.exp(-jnp.abs(x))
    # binary_cross_entropy_with_logits (reduction='none'), numerically stable:
    #   ce = max(x, 0) - x*t + log1p(exp(-|x|))
    ce = jnp.maximum(x, 0.0) - x * t + jnp.log1p(z)
    # sigmoid(x) from the same exp: 1/(1+z) for x>=0, z/(1+z) for x<0.
    if approx_recip:
        r = pl.reciprocal(1.0 + z, approx=True)   # single EUP op, no Newton refine
    else:
        r = 1.0 / (1.0 + z)
    p = jnp.where(x >= 0.0, r, z * r)

    # 1 - p_t  where  p_t = p*t + (1-p)*(1-t); clamp so pow / approx rounding
    # can never see a negative base.
    one_minus_pt = jnp.maximum(p + t - 2.0 * p * t, 0.0)

    g = float(gamma)
    if g.is_integer() and 0.0 <= g <= 8.0:
        modulator = _static_int_pow(one_minus_pt, int(g))  # gamma=2 -> one multiply
    else:
        modulator = one_minus_pt ** g                       # non-integer gamma fallback

    loss = ce * (alpha * modulator)

    # Zero out padded rows/cols of the tail tiles (padding is NOT loss-neutral).
    if mask_rows or mask_cols:
        mask = None
        if mask_rows:
            row_ids = (pl.program_id(0) * tr
                       + lax.broadcasted_iota(jnp.int32, (tr, tc), 0))
            mask = row_ids < true_rows
        if mask_cols:
            col_ids = (pl.program_id(1) * tc
                       + lax.broadcasted_iota(jnp.int32, (tr, tc), 1))
            cmask = col_ids < true_cols
            mask = cmask if mask is None else (mask & cmask)
        loss = jnp.where(mask, loss, 0.0)

    # Per-tile partial: collapse sublane groups then lane groups — elements at
    # identical (sublane, lane) positions across vregs, i.e. pure VPU adds.
    s = loss.reshape(tr // 8, 8, tc).sum(axis=0)                  # (8, tc)
    partial_ref[...] = s.reshape(8, tc // 128, 128).sum(axis=1)   # (8, 128)


def focal_loss(logits, targets, alpha=0.25, gamma=2, *,
               block_rows=None, block_cols=None, approx_reciprocal=True):
    """Mean sigmoid focal loss over all elements, matching the PyTorch module.

    Inputs may be f32 or bf16 (or int8/bool targets for hard 0/1 labels —
    exact, and ~2.7x fewer HBM bytes than f32/f32); the f32 upcast happens
    in-kernel on the VPU.
    """
    assert logits.shape == targets.shape and logits.ndim == 2
    n, d = logits.shape

    wire_target, f32_cap, vmem_limit = _vmem_budgets()
    itemsize = jnp.dtype(logits.dtype).itemsize

    # Column tile: lane-dense multiple of 128.
    col_cap = _MAX_COL_TILE if block_cols is None else max(128, _round_up(block_cols, 128))
    tc = min(_round_up(d, 128), col_cap)

    # Row tile: capped both by wire bytes (actual dtype) and by the f32
    # temporary footprint of the in-kernel upcast.
    if block_rows is not None:
        rows_cap = max(8, (block_rows // 8) * 8)
    else:
        rows_cap = max(8, (min(wire_target // (itemsize * tc),
                               f32_cap // (4 * tc)) // 8) * 8)
    tr = min(_round_up(n, 8), rows_cap)

    n_pad = _round_up(n, tr)
    d_pad = _round_up(d, tc)
    grid = (n_pad // tr, d_pad // tc)

    # v7x has 2 TensorCores: give the scheduler at least two parallel steps for
    # mid-size inputs instead of one monolithic block.
    if grid == (1, 1) and tr > 8 and n * d * itemsize >= (512 << 10):
        tr = max(8, _round_up(tr // 2, 8))
        n_pad = _round_up(n, tr)
        grid = (n_pad // tr, d_pad // tc)

    if n_pad != n or d_pad != d:
        pad_cfg = ((0, n_pad - n), (0, d_pad - d))
        logits = jnp.pad(logits, pad_cfg)
        targets = jnp.pad(targets, pad_cfg)

    kernel = functools.partial(
        _focal_loss_tile_kernel,
        alpha=float(alpha), gamma=gamma,
        true_rows=n, true_cols=d,
        mask_rows=(n_pad != n), mask_cols=(d_pad != d),
        approx_recip=bool(approx_reciprocal))

    partials = pl.pallas_call(
        kernel,
        out_shape=jax.ShapeDtypeStruct((grid[0], grid[1], 8, 128), jnp.float32),
        grid_spec=pltpu.PrefetchScalarGridSpec(
            num_scalar_prefetch=0,
            grid=grid,
            in_specs=[
                pl.BlockSpec((tr, tc), lambda i, j: (i, j)),
                pl.BlockSpec((tr, tc), lambda i, j: (i, j)),
            ],
            # Leading grid dims squeezed; kernel writes a lane-dense (8, 128) block.
            out_specs=pl.BlockSpec((None, None, 8, 128), lambda i, j: (i, j, 0, 0)),
        ),
        compiler_params=pltpu.CompilerParams(
            dimension_semantics=("parallel", "parallel"),
            vmem_limit_bytes=vmem_limit,
        ),
    )(logits, targets)   # native dtype on the wire; f32 upcast happens in-kernel

    # Tiny final reduction (grid0*grid1*8*128 floats) + the mean over TRUE extent.
    return jnp.sum(partials) / float(n * d)


def _focal_loss_ref(logits, targets, alpha=0.25, gamma=2):
    x = logits.astype(jnp.float32)
    t = targets.astype(jnp.float32)
    p = jax.nn.sigmoid(x)
    ce = jnp.maximum(x, 0.0) - x * t + jnp.log1p(jnp.exp(-jnp.abs(x)))
    p_t = p * t + (1.0 - p) * (1.0 - t)
    return jnp.mean(ce * (alpha * (1.0 - p_t) ** gamma))


if __name__ == "__main__":
    key = jax.random.PRNGKey(0)
    k1, k2, k3, k4 = jax.random.split(key, 4)

    # Small shapes consistent with the module (any equal-shape logits/targets).
    n, d = 64, 256
    logits = jax.random.normal(k1, (n, d), dtype=jnp.float32) * 2.0
    targets = (jax.random.uniform(k2, (n, d)) > 0.5).astype(jnp.float32)
    ref = _focal_loss_ref(logits, targets, alpha=0.25, gamma=2)

    # Default path (single block, approx reciprocal).
    out = jax.block_until_ready(focal_loss(logits, targets, alpha=0.25, gamma=2))
    assert jnp.allclose(out, ref, rtol=1e-3, atol=1e-7), (out, ref)

    # Forced multi-tile 2-D grid (4 x 2), exact reciprocal -> tight tolerance.
    out_tiled = jax.block_until_ready(
        focal_loss(logits, targets, alpha=0.25, gamma=2,
                   block_rows=16, block_cols=128, approx_reciprocal=False))
    assert jnp.allclose(out_tiled, ref, rtol=1e-5, atol=1e-7), (out_tiled, ref)

    # bf16 inputs stay bf16 on the wire (half the HBM bytes); upcast in-kernel.
    out_bf16 = jax.block_until_ready(
        focal_loss(logits.astype(jnp.bfloat16), targets.astype(jnp.bfloat16)))
    ref_bf16 = _focal_loss_ref(logits.astype(jnp.bfloat16),
                               targets.astype(jnp.bfloat16))
    assert jnp.allclose(out_bf16, ref_bf16, rtol=1e-3, atol=1e-6), (out_bf16, ref_bf16)

    # Awkward (non-(8,128)-divisible) shape: padded + masked tail tiles.
    n2, d2 = 50, 200
    logits2 = jax.random.normal(k3, (n2, d2), dtype=jnp.float32) * 2.0
    targets2 = (jax.random.uniform(k4, (n2, d2)) > 0.5).astype(jnp.float32)
    out2 = jax.block_until_ready(focal_loss(logits2, targets2, alpha=0.25, gamma=2))
    ref2 = _focal_loss_ref(logits2, targets2, alpha=0.25, gamma=2)
    assert jnp.allclose(out2, ref2, rtol=1e-3, atol=1e-7), (out2, ref2)

    print("KERNEL_OK")
</pallas_src>

<mosaic_0001>
module attributes {stable_mosaic.version = 11 : i64} {
  func.func @_focal_loss_tile_kernel(%arg0: i32, %arg1: i32, %arg2: memref<64x256xf32, #tpu.memory_space<vmem>>, %arg3: memref<64x256xf32, #tpu.memory_space<vmem>>, %arg4: memref<1x1x8x128xf32, #tpu.memory_space<vmem>>) attributes {dimension_semantics = [#tpu.dimension_semantics<parallel>, #tpu.dimension_semantics<parallel>], iteration_bounds = array<i64: 1, 1>, scalar_prefetch = 0 : i64, scratch_operands = 0 : i64, tpu.core_type = #tpu.core_type<tc>, window_params = [{transform_indices = @transform_0, window_bounds = array<i64: 64, 256>}, {transform_indices = @transform_1, window_bounds = array<i64: 64, 256>}, {transform_indices = @transform_2, window_bounds = array<i64: 1, 1, 8, 128>}]} {
    %c0 = arith.constant 0 : index
    %c0_0 = arith.constant 0 : index
    %0 = vector.load %arg2[%c0, %c0_0] : memref<64x256xf32, #tpu.memory_space<vmem>>, vector<64x256xf32>
    %c0_1 = arith.constant 0 : index
    %c0_2 = arith.constant 0 : index
    %1 = vector.load %arg3[%c0_1, %c0_2] : memref<64x256xf32, #tpu.memory_space<vmem>>, vector<64x256xf32>
    %2 = math.absf %0 : vector<64x256xf32>
    %cst = arith.constant 0.000000e+00 : f32
    %3 = vector.broadcast %cst : f32 to vector<64x256xf32>
    %4 = arith.subf %3, %2 : vector<64x256xf32>
    %5 = math.exp %4 : vector<64x256xf32>
    %cst_3 = arith.constant 0.000000e+00 : f32
    %6 = vector.broadcast %cst_3 : f32 to vector<64x256xf32>
    %7 = arith.maximumf %0, %6 : vector<64x256xf32>
    %8 = arith.mulf %0, %1 : vector<64x256xf32>
    %9 = arith.subf %7, %8 : vector<64x256xf32>
    %10 = math.log1p %5 : vector<64x256xf32>
    %11 = arith.addf %9, %10 : vector<64x256xf32>
    %cst_4 = arith.constant 1.000000e+00 : f32
    %12 = vector.broadcast %cst_4 : f32 to vector<64x256xf32>
    %13 = arith.addf %12, %5 : vector<64x256xf32>
    %14 = tpu.reciprocal %13 {approx = true} : vector<64x256xf32> -> vector<64x256xf32>
    %cst_5 = arith.constant 0.000000e+00 : f32
    %15 = vector.broadcast %cst_5 : f32 to vector<64x256xf32>
    %16 = arith.cmpf oge, %0, %15 : vector<64x256xf32>
    %17 = arith.mulf %5, %14 : vector<64x256xf32>
    %18 = arith.select %16, %14, %17 : vector<64x256xi1>, vector<64x256xf32>
    %19 = arith.addf %18, %1 : vector<64x256xf32>
    %cst_6 = arith.constant 2.000000e+00 : f32
    %20 = vector.broadcast %cst_6 : f32 to vector<64x256xf32>
    %21 = arith.mulf %20, %18 : vector<64x256xf32>
    %22 = arith.mulf %21, %1 : vector<64x256xf32>
    %23 = arith.subf %19, %22 : vector<64x256xf32>
    %cst_7 = arith.constant 0.000000e+00 : f32
    %24 = vector.broadcast %cst_7 : f32 to vector<64x256xf32>
    %25 = arith.maximumf %23, %24 : vector<64x256xf32>
    %26 = arith.mulf %25, %25 : vector<64x256xf32>
    %cst_8 = arith.constant 2.500000e-01 : f32
    %27 = vector.broadcast %cst_8 : f32 to vector<64x256xf32>
    %28 = arith.mulf %27, %26 : vector<64x256xf32>
    %29 = arith.mulf %11, %28 : vector<64x256xf32>
    %30 = vector.shape_cast %29 : vector<64x256xf32> to vector<8x8x256xf32>
    %cst_9 = arith.constant dense<0.000000e+00> : vector<8x256xf32>
    %31 = vector.multi_reduction <add>, %30, %cst_9 [0] : vector<8x8x256xf32> to vector<8x256xf32>
    %32 = vector.shape_cast %31 : vector<8x256xf32> to vector<8x2x128xf32>
    %cst_10 = arith.constant dense<0.000000e+00> : vector<8x128xf32>
    %33 = vector.multi_reduction <add>, %32, %cst_10 [1] : vector<8x2x128xf32> to vector<8x128xf32>
    %c0_11 = arith.constant 0 : index
    %c0_12 = arith.constant 0 : index
    %c0_13 = arith.constant 0 : index
    %c0_14 = arith.constant 0 : index
    %34 = vector.load %arg4[%c0_11, %c0_12, %c0_13, %c0_14] : memref<1x1x8x128xf32, #tpu.memory_space<vmem>>, vector<1x1x8x128xf32>
    %35 = vector.shape_cast %34 : vector<1x1x8x128xf32> to vector<8x128xf32>
    %36 = vector.shape_cast %33 : vector<8x128xf32> to vector<1x1x8x128xf32>
    tpu.vector_store %arg4[%c0_11, %c0_12, %c0_13, %c0_14], %36 {strides = array<i32>} : memref<1x1x8x128xf32, #tpu.memory_space<vmem>>, vector<1x1x8x128xf32>,
    return
  }
  func.func @transform_0(%arg0: i32, %arg1: i32) -> (i32, i32) {
    %c0_i32 = arith.constant 0 : i32
    return %arg0, %arg1 : i32, i32
  }
  func.func @transform_1(%arg0: i32, %arg1: i32) -> (i32, i32) {
    %c0_i32 = arith.constant 0 : i32
    return %arg0, %arg1 : i32, i32
  }
  func.func @transform_2(%arg0: i32, %arg1: i32) -> (i32, i32, i32, i32) {
    %c0_i32 = arith.constant 0 : i32
    %c0_i32_0 = arith.constant 0 : i32
    %c0_i32_1 = arith.constant 0 : i32
    return %arg0, %arg1, %c0_i32, %c0_i32_0 : i32, i32, i32, i32
  }
}

</mosaic_0001>

<llo_original>
// kernel: tpu_custom_call.1
$region0: #{tpu_custom_call.1}
  #allocation0 [shape = 'u32[]', space=smem, size = 0x4, offset = 0x4, fixed_abs, tag = 'smem constant byte address 0x4 - core index']
  #allocation1 [shape = 'u32[72,128]{1,0:T(1,128)}', space=vmem, size = 0x9000, scoped, tag = 'internal scratch']
  %s0 = inlined_call_operand.hbm [shape: f32[64,256], index: 0, kind: input, shape index: {}]
  %s1 = inlined_call_operand.hbm [shape: f32[64,256], index: 1, kind: input, shape index: {}]
  %s2 = inlined_call_operand.hbm [shape: f32[1,1,8,128], index: 2, kind: output, shape index: {}]
  %s3 = sld [smem:[#allocation0]]
  $region26: #{tpu_custom_call.1} parent=0
    _
  %s5 = ssub.s32 1, %s3
  %s6 = scalar_select 0, %s5, %s3
  $region1: #{tpu_custom_call.1} parent=0
    #allocation2 [shape = 'u8[65536]{0}', space=vmem, size = 0x10000, scoped, tag = 'input window, operand 0, single buffered']
    #allocation3 [shape = 's32[1]{0}', space=sflag, size = 0x4, scoped, tag = 'scoped memory for tpu_custom_call.1']
    #allocation4 [shape = 's32[1]{0}', space=sflag, size = 0x4, scoped, tag = 'scoped memory for tpu_custom_call.1']
    #allocation5 [shape = 'u8[65536]{0}', space=vmem, size = 0x10000, scoped, tag = 'input window, operand 1, single buffered']
    #allocation6 [shape = 's32[1]{0}', space=sflag, size = 0x4, scoped, tag = 'scoped memory for tpu_custom_call.1']
    #allocation7 [shape = 'u8[4096]{0}', space=vmem, size = 0x1000, scoped, tag = 'output window, operand 0, single buffered']
    %7 = vsyncpa [#allocation3], 0
    %8 = vsyncpa [#allocation6], 0
    %9 = vsyncpa [#allocation4], 0
    // Predicated region
    $region2: #{tpu_custom_call.1} parent=1 // pred_check
      _
    $region3: #{tpu_custom_call.1} parent=1 // pred_check_branch
      %11 = sbr.rel (0) target = $region5
    $region4: #{tpu_custom_call.1} parent=1 // pred_region
      %13 = vsyncadd [#allocation3], 0
      %s14 = sshll.u32 %s0, 4
      %s15 = int_to_ptr.hbm [resolvable:$true] %s14
      %s16 = sshll.u32 [#allocation2], 4
      %s17 = int_to_ptr.vmem [resolvable:$true] %s16
      %22 = dma.hbm_to_vmem [thread:$0]  %s15, 2048, %s17, [#allocation3], 256, 256, 16
    $region5: #{tpu_custom_call.1} parent=1 // pred_fallthru
      _
    // Predicated region
    $region6: #{tpu_custom_call.1} parent=1 // pred_check
      _
    $region7: #{tpu_custom_call.1} parent=1 // pred_check_branch
      %24 = sbr.rel (0) target = $region9
    $region8: #{tpu_custom_call.1} parent=1 // pred_region
      %26 = vsyncadd [#allocation6], 0
      %s27 = sshll.u32 %s1, 4
      %s28 = int_to_ptr.hbm [resolvable:$true] %s27
      %s29 = sshll.u32 [#allocation5], 4
      %s30 = int_to_ptr.vmem [resolvable:$true] %s29
      %35 = dma.hbm_to_vmem [thread:$0]  %s28, 2048, %s30, [#allocation6], 256, 256, 16
    $region9: #{tpu_custom_call.1} parent=1 // pred_fallthru
      _
    // Predicated region
    $region10: #{tpu_custom_call.1} parent=1 // pred_check
      _
    $region11: #{tpu_custom_call.1} parent=1 // pred_check_branch
      %37 = sbr.rel (0) target = $region13
    $region12: #{tpu_custom_call.1} parent=1 // pred_region
      %39 = dma.done [#allocation3], 2048
    $region13: #{tpu_custom_call.1} parent=1 // pred_fallthru
      _
    // Predicated region
    $region14: #{tpu_custom_call.1} parent=1 // pred_check
      _
    $region15: #{tpu_custom_call.1} parent=1 // pred_check_branch
      %41 = sbr.rel (0) target = $region17
    $region16: #{tpu_custom_call.1} parent=1 // pred_region
      %43 = dma.done [#allocation6], 2048
    $region17: #{tpu_custom_call.1} parent=1 // pred_fallthru
      _
    %v44 = vld [vmem:[#allocation2] sm:$0xff]
    %v45 = vld [vmem:[#allocation2 + $0x8] sm:$0xff]
    %v46 = vld [vmem:[#allocation2 + $0x10] sm:$0xff]
    %v47 = vld [vmem:[#allocation2 + $0x18] sm:$0xff]
    %v48 = vld [vmem:[#allocation2 + $0x20] sm:$0xff]
    %v49 = vld [vmem:[#allocation2 + $0x28] sm:$0xff]
    %v50 = vld [vmem:[#allocation2 + $0x30] sm:$0xff]
    %v51 = vld [vmem:[#allocation2 + $0x38] sm:$0xff]
    %v52 = vld [vmem:[#allocation2 + $0x40] sm:$0xff]
    %v53 = vld [vmem:[#allocation2 + $0x48] sm:$0xff]
    %v54 = vld [vmem:[#allocation2 + $0x50] sm:$0xff]
    %v55 = vld [vmem:[#allocation2 + $0x58] sm:$0xff]
    %v56 = vld [vmem:[#allocation2 + $0x60] sm:$0xff]
    %v57 = vld [vmem:[#allocation2 + $0x68] sm:$0xff]
    %v58 = vld [vmem:[#allocation2 + $0x70] sm:$0xff]
    %v59 = vld [vmem:[#allocation2 + $0x78] sm:$0xff]
    %v60 = vld [vmem:[#allocation5] sm:$0xff]
    %v61 = vld [vmem:[#allocation5 + $0x8] sm:$0xff]
    %v62 = vld [vmem:[#allocation5 + $0x10] sm:$0xff]
    %v63 = vld [vmem:[#allocation5 + $0x18] sm:$0xff]
    %v64 = vld [vmem:[#allocation5 + $0x20] sm:$0xff]
    %v65 = vld [vmem:[#allocation5 + $0x28] sm:$0xff]
    %v66 = vld [vmem:[#allocation5 + $0x30] sm:$0xff]
    %v67 = vld [vmem:[#allocation5 + $0x38] sm:$0xff]
    %v68 = vld [vmem:[#allocation5 + $0x40] sm:$0xff]
    %v69 = vld [vmem:[#allocation5 + $0x48] sm:$0xff]
    %v70 = vld [vmem:[#allocation5 + $0x50] sm:$0xff]
    %v71 = vld [vmem:[#allocation5 + $0x58] sm:$0xff]
    %v72 = vld [vmem:[#allocation5 + $0x60] sm:$0xff]
    %v73 = vld [vmem:[#allocation5 + $0x68] sm:$0xff]
    %v74 = vld [vmem:[#allocation5 + $0x70] sm:$0xff]
    %v75 = vld [vmem:[#allocation5 + $0x78] sm:$0xff]
    %v76 = vand.u32 2147483647, %v44
    %v77 = vand.u32 2147483647, %v45
    %v78 = vand.u32 2147483647, %v46
    %v79 = vand.u32 2147483647, %v47
    %v80 = vand.u32 2147483647, %v48
    %v81 = vand.u32 2147483647, %v49
    %v82 = vand.u32 2147483647, %v50
    %v83 = vand.u32 2147483647, %v51
    %v84 = vand.u32 2147483647, %v52
    %v85 = vand.u32 2147483647, %v53
    %v86 = vand.u32 2147483647, %v54
    %v87 = vand.u32 2147483647, %v55
    %v88 = vand.u32 2147483647, %v56
    %v89 = vand.u32 2147483647, %v57
    %v90 = vand.u32 2147483647, %v58
    %v91 = vand.u32 2147483647, %v59
    %v92 = vsub.f32 0.0, %v76
    %v93 = vsub.f32 0.0, %v77
    %v94 = vsub.f32 0.0, %v78
    %v95 = vsub.f32 0.0, %v79
    %v96 = vsub.f32 0.0, %v80
    %v97 = vsub.f32 0.0, %v81
    %v98 = vsub.f32 0.0, %v82
    %v99 = vsub.f32 0.0, %v83
    %v100 = vsub.f32 0.0, %v84
    %v101 = vsub.f32 0.0, %v85
    %v102 = vsub.f32 0.0, %v86
    %v103 = vsub.f32 0.0, %v87
    %v104 = vsub.f32 0.0, %v88
    %v105 = vsub.f32 0.0, %v89
    %v106 = vsub.f32 0.0, %v90
    %v107 = vsub.f32 0.0, %v91
    %v108 = vmul.f32 %v92, 1.442695
    %v109 = vpow.pop %v108
    %v110 = vmul.f32 %v93, 1.442695
    %v111 = vpow.pop %v110
    %v112 = vmul.f32 %v94, 1.442695
    %v113 = vpow.pop %v112
    %v114 = vmul.f32 %v95, 1.442695
    %v115 = vpow.pop %v114
    %v116 = vmul.f32 %v96, 1.442695
    %v117 = vpow.pop %v116
    %v118 = vmul.f32 %v97, 1.442695
    %v119 = vpow.pop %v118
    %v120 = vmul.f32 %v98, 1.442695
    %v121 = vpow.pop %v120
    %v122 = vmul.f32 %v99, 1.442695
    %v123 = vpow.pop %v122
    %v124 = vmul.f32 %v100, 1.442695
    %v125 = vpow.pop %v124
    %v126 = vmul.f32 %v101, 1.442695
    %v127 = vpow.pop %v126
    %v128 = vmul.f32 %v102, 1.442695
    %v129 = vpow.pop %v128
    %v130 = vmul.f32 %v103, 1.442695
    %v131 = vpow.pop %v130
    %v132 = vmul.f32 %v104, 1.442695
    %v133 = vpow.pop %v132
    %v134 = vmul.f32 %v105, 1.442695
    %v135 = vpow.pop %v134
    %v136 = vmul.f32 %v106, 1.442695
    %v137 = vpow.pop %v136
    %v138 = vmul.f32 %v107, 1.442695
    %v139 = vpow.pop %v138
    %v140 = vmax.f32 %v44, 0.0
    %v141 = vmax.f32 %v45, 0.0
    %v142 = vmax.f32 %v46, 0.0
    %v143 = vmax.f32 %v47, 0.0
    %v144 = vmax.f32 %v48, 0.0
    %v145 = vmax.f32 %v49, 0.0
    %v146 = vmax.f32 %v50, 0.0
    %v147 = vmax.f32 %v51, 0.0
    %v148 = vmax.f32 %v52, 0.0
    %v149 = vmax.f32 %v53, 0.0
    %v150 = vmax.f32 %v54, 0.0
    %v151 = vmax.f32 %v55, 0.0
    %v152 = vmax.f32 %v56, 0.0
    %v153 = vmax.f32 %v57, 0.0
    %v154 = vmax.f32 %v58, 0.0
    %v155 = vmax.f32 %v59, 0.0
    %v156 = vmul.f32 %v44, %v60
    %v157 = vmul.f32 %v45, %v61
    %v158 = vmul.f32 %v46, %v62
    %v159 = vmul.f32 %v47, %v63
    %v160 = vmul.f32 %v48, %v64
    %v161 = vmul.f32 %v49, %v65
    %v162 = vmul.f32 %v50, %v66
    %v163 = vmul.f32 %v51, %v67
    %v164 = vmul.f32 %v52, %v68
    %v165 = vmul.f32 %v53, %v69
    %v166 = vmul.f32 %v54, %v70
    %v167 = vmul.f32 %v55, %v71
    %v168 = vmul.f32 %v56, %v72
    %v169 = vmul.f32 %v57, %v73
    %v170 = vmul.f32 %v58, %v74
    %v171 = vmul.f32 %v59, %v75
    %v172 = vsub.f32 %v140, %v156
    %v173 = vsub.f32 %v141, %v157
    %v174 = vsub.f32 %v142, %v158
    %v175 = vsub.f32 %v143, %v159
    %v176 = vsub.f32 %v144, %v160
    %v177 = vsub.f32 %v145, %v161
    %v178 = vsub.f32 %v146, %v162
    %v179 = vsub.f32 %v147, %v163
    %v180 = vsub.f32 %v148, %v164
    %v181 = vsub.f32 %v149, %v165
    %v182 = vsub.f32 %v150, %v166
    %v183 = vsub.f32 %v151, %v167
    %v184 = vsub.f32 %v152, %v168
    %v185 = vsub.f32 %v153, %v169
    %v186 = vsub.f32 %v154, %v170
    %v187 = vsub.f32 %v155, %v171
    %v188 = vadd.f32 %v109, 1.0
    %v189 = vlog2.pop %v188
    %v190 = vmul.f32 %v189, 0.6931472
    %v191 = vmul.f32 -0.5, %v109
    %v192 = vadd.f32 %v191, 1.0
    %v193 = vmul.f32 %v192, %v109
    %v194 = vand.u32 2147483647, %v109
    %vm195 = vcmp.lt.f32.partialorder %v194, 0.0004427343
    %v196 = vsel %vm195, %v193, %v190
    %v197 = vadd.f32 %v111, 1.0
    %v198 = vlog2.pop %v197
    %v199 = vmul.f32 %v198, 0.6931472
    %v200 = vmul.f32 -0.5, %v111
    %v201 = vadd.f32 %v200, 1.0
    %v202 = vmul.f32 %v201, %v111
    %v203 = vand.u32 2147483647, %v111
    %vm204 = vcmp.lt.f32.partialorder %v203, 0.0004427343
    %v205 = vsel %vm204, %v202, %v199
    %v206 = vadd.f32 %v113, 1.0
    %v207 = vlog2.pop %v206
    %v208 = vmul.f32 %v207, 0.6931472
    %v209 = vmul.f32 -0.5, %v113
    %v210 = vadd.f32 %v209, 1.0
    %v211 = vmul.f32 %v210, %v113
    %v212 = vand.u32 2147483647, %v113
    %vm213 = vcmp.lt.f32.partialorder %v212, 0.0004427343
    %v214 = vsel %vm213, %v211, %v208
    %v215 = vadd.f32 %v115, 1.0
    %v216 = vlog2.pop %v215
    %v217 = vmul.f32 %v216, 0.6931472
    %v218 = vmul.f32 -0.5, %v115
    %v219 = vadd.f32 %v218, 1.0
    %v220 = vmul.f32 %v219, %v115
    %v221 = vand.u32 2147483647, %v115
    %vm222 = vcmp.lt.f32.partialorder %v221, 0.0004427343
    %v223 = vsel %vm222, %v220, %v217
    %v224 = vadd.f32 %v117, 1.0
    %v225 = vlog2.pop %v224
    %v226 = vmul.f32 %v225, 0.6931472
    %v227 = vmul.f32 -0.5, %v117
    %v228 = vadd.f32 %v227, 1.0
    %v229 = vmul.f32 %v228, %v117
    %v230 = vand.u32 2147483647, %v117
    %vm231 = vcmp.lt.f32.partialorder %v230, 0.0004427343
    %v232 = vsel %vm231, %v229, %v226
    %v233 = vadd.f32 %v119, 1.0
    %v234 = vlog2.pop %v233
    %v235 = vmul.f32 %v234, 0.6931472
    %v236 = vmul.f32 -0.5, %v119
    %v237 = vadd.f32 %v236, 1.0
    %v238 = vmul.f32 %v237, %v119
    %v239 = vand.u32 2147483647, %v119
    %vm240 = vcmp.lt.f32.partialorder %v239, 0.0004427343
    %v241 = vsel %vm240, %v238, %v235
    %v242 = vadd.f32 %v121, 1.0
    %v243 = vlog2.pop %v242
    %v244 = vmul.f32 %v243, 0.6931472
    %v245 = vmul.f32 -0.5, %v121
    %v246 = vadd.f32 %v245, 1.0
    %v247 = vmul.f32 %v246, %v121
    %v248 = vand.u32 2147483647, %v121
    %vm249 = vcmp.lt.f32.partialorder %v248, 0.0004427343
    %v250 = vsel %vm249, %v247, %v244
    %v251 = vadd.f32 %v123, 1.0
    %v252 = vlog2.pop %v251
    %v253 = vmul.f32 %v252, 0.6931472
    %v254 = vmul.f32 -0.5, %v123
    %v255 = vadd.f32 %v254, 1.0
    %v256 = vmul.f32 %v255, %v123
    %v257 = vand.u32 2147483647, %v123
    %vm258 = vcmp.lt.f32.partialorder %v257, 0.0004427343
    %v259 = vsel %vm258, %v256, %v253
    %v260 = vadd.f32 %v125, 1.0
    %v261 = vlog2.pop %v260
    %v262 = vmul.f32 %v261, 0.6931472
    %v263 = vmul.f32 -0.5, %v125
    %v264 = vadd.f32 %v263, 1.0
    %v265 = vmul.f32 %v264, %v125
    %v266 = vand.u32 2147483647, %v125
    %vm267 = vcmp.lt.f32.partialorder %v266, 0.0004427343
    %v268 = vsel %vm267, %v265, %v262
    %v269 = vadd.f32 %v127, 1.0
    %v270 = vlog2.pop %v269
    %v271 = vmul.f32 %v270, 0.6931472
    %v272 = vmul.f32 -0.5, %v127
    %v273 = vadd.f32 %v272, 1.0
    %v274 = vmul.f32 %v273, %v127
    %v275 = vand.u32 2147483647, %v127
    %vm276 = vcmp.lt.f32.partialorder %v275, 0.0004427343
    %v277 = vsel %vm276, %v274, %v271
    %v278 = vadd.f32 %v129, 1.0
    %v279 = vlog2.pop %v278
    %v280 = vmul.f32 %v279, 0.6931472
    %v281 = vmul.f32 -0.5, %v129
    %v282 = vadd.f32 %v281, 1.0
    %v283 = vmul.f32 %v282, %v129
    %v284 = vand.u32 2147483647, %v129
    %vm285 = vcmp.lt.f32.partialorder %v284, 0.0004427343
    %v286 = vsel %vm285, %v283, %v280
    %v287 = vadd.f32 %v131, 1.0
    %v288 = vlog2.pop %v287
    %v289 = vmul.f32 %v288, 0.6931472
    %v290 = vmul.f32 -0.5, %v131
    %v291 = vadd.f32 %v290, 1.0
    %v292 = vmul.f32 %v291, %v131
    %v293 = vand.u32 2147483647, %v131
    %vm294 = vcmp.lt.f32.partialorder %v293, 0.0004427343
    %v295 = vsel %vm294, %v292, %v289
    %v296 = vadd.f32 %v133, 1.0
    %v297 = vlog2.pop %v296
    %v298 = vmul.f32 %v297, 0.6931472
    %v299 = vmul.f32 -0.5, %v133
    %v300 = vadd.f32 %v299, 1.0
    %v301 = vmul.f32 %v300, %v133
    %v302 = vand.u32 2147483647, %v133
    %vm303 = vcmp.lt.f32.partialorder %v302, 0.0004427343
    %v304 = vsel %vm303, %v301, %v298
    %v305 = vadd.f32 %v135, 1.0
    %v306 = vlog2.pop %v305
    %v307 = vmul.f32 %v306, 0.6931472
    %v308 = vmul.f32 -0.5, %v135
    %v309 = vadd.f32 %v308, 1.0
    %v310 = vmul.f32 %v309, %v135
    %v311 = vand.u32 2147483647, %v135
    %vm312 = vcmp.lt.f32.partialorder %v311, 0.0004427343
    %v313 = vsel %vm312, %v310, %v307
    %v314 = vadd.f32 %v137, 1.0
    %v315 = vlog2.pop %v314
    %v316 = vmul.f32 %v315, 0.6931472
    %v317 = vmul.f32 -0.5, %v137
    %v318 = vadd.f32 %v317, 1.0
    %v319 = vmul.f32 %v318, %v137
    %v320 = vand.u32 2147483647, %v137
    %vm321 = vcmp.lt.f32.partialorder %v320, 0.0004427343
    %v322 = vsel %vm321, %v319, %v316
    %v323 = vadd.f32 %v139, 1.0
    %v324 = vlog2.pop %v323
    %v325 = vmul.f32 %v324, 0.6931472
    %v326 = vmul.f32 -0.5, %v139
    %v327 = vadd.f32 %v326, 1.0
    %v328 = vmul.f32 %v327, %v139
    %v329 = vand.u32 2147483647, %v139
    %vm330 = vcmp.lt.f32.partialorder %v329, 0.0004427343
    %v331 = vsel %vm330, %v328, %v325
    %v332 = vadd.f32 %v172, %v196
    %v333 = vadd.f32 %v173, %v205
    %v334 = vadd.f32 %v174, %v214
    %v335 = vadd.f32 %v175, %v223
    %v336 = vadd.f32 %v176, %v232
    %v337 = vadd.f32 %v177, %v241
    %v338 = vadd.f32 %v178, %v250
    %v339 = vadd.f32 %v179, %v259
    %v340 = vadd.f32 %v180, %v268
    %v341 = vadd.f32 %v181, %v277
    %v342 = vadd.f32 %v182, %v286
    %v343 = vadd.f32 %v183, %v295
    %v344 = vadd.f32 %v184, %v304
    %v345 = vadd.f32 %v185, %v313
    %v346 = vadd.f32 %v186, %v322
    %v347 = vadd.f32 %v187, %v331
    %v348 = vadd.f32 %v109, 1.0
    %v349 = vadd.f32 %v111, 1.0
    %v350 = vadd.f32 %v113, 1.0
    %v351 = vadd.f32 %v115, 1.0
    %v352 = vadd.f32 %v117, 1.0
    %v353 = vadd.f32 %v119, 1.0
    %v354 = vadd.f32 %v121, 1.0
    %v355 = vadd.f32 %v123, 1.0
    %v356 = vadd.f32 %v125, 1.0
    %v357 = vadd.f32 %v127, 1.0
    %v358 = vadd.f32 %v129, 1.0
    %v359 = vadd.f32 %v131, 1.0
    %v360 = vadd.f32 %v133, 1.0
    %v361 = vadd.f32 %v135, 1.0
    %v362 = vadd.f32 %v137, 1.0
    %v363 = vadd.f32 %v139, 1.0
    %v364 = vrcp.pop %v348
    %v365 = vrcp.pop %v349
    %v366 = vrcp.pop %v350
    %v367 = vrcp.pop %v351
    %v368 = vrcp.pop %v352
    %v369 = vrcp.pop %v353
    %v370 = vrcp.pop %v354
    %v371 = vrcp.pop %v355
    %v372 = vrcp.pop %v356
    %v373 = vrcp.pop %v357
    %v374 = vrcp.pop %v358
    %v375 = vrcp.pop %v359
    %v376 = vrcp.pop %v360
    %v377 = vrcp.pop %v361
    %v378 = vrcp.pop %v362
    %v379 = vrcp.pop %v363
    %vm380 = vcmp.ge.f32.partialorder %v44, 0.0
    %vm381 = vcmp.ge.f32.partialorder %v45, 0.0
    %vm382 = vcmp.ge.f32.partialorder %v46, 0.0
    %vm383 = vcmp.ge.f32.partialorder %v47, 0.0
    %vm384 = vcmp.ge.f32.partialorder %v48, 0.0
    %vm385 = vcmp.ge.f32.partialorder %v49, 0.0
    %vm386 = vcmp.ge.f32.partialorder %v50, 0.0
    %vm387 = vcmp.ge.f32.partialorder %v51, 0.0
    %vm388 = vcmp.ge.f32.partialorder %v52, 0.0
    %vm389 = vcmp.ge.f32.partialorder %v53, 0.0
    %vm390 = vcmp.ge.f32.partialorder %v54, 0.0
    %vm391 = vcmp.ge.f32.partialorder %v55, 0.0
    %vm392 = vcmp.ge.f32.partialorder %v56, 0.0
    %vm393 = vcmp.ge.f32.partialorder %v57, 0.0
    %vm394 = vcmp.ge.f32.partialorder %v58, 0.0
    %vm395 = vcmp.ge.f32.partialorder %v59, 0.0
    %v396 = vmul.f32 %v109, %v364
    %v397 = vmul.f32 %v111, %v365
    %v398 = vmul.f32 %v113, %v366
    %v399 = vmul.f32 %v115, %v367
    %v400 = vmul.f32 %v117, %v368
    %v401 = vmul.f32 %v119, %v369
    %v402 = vmul.f32 %v121, %v370
    %v403 = vmul.f32 %v123, %v371
    %v404 = vmul.f32 %v125, %v372
    %v405 = vmul.f32 %v127, %v373
    %v406 = vmul.f32 %v129, %v374
    %v407 = vmul.f32 %v131, %v375
    %v408 = vmul.f32 %v133, %v376
    %v409 = vmul.f32 %v135, %v377
    %v410 = vmul.f32 %v137, %v378
    %v411 = vmul.f32 %v139, %v379
    %v412 = vsel %vm380, %v364, %v396
    %v413 = vsel %vm381, %v365, %v397
    %v414 = vsel %vm382, %v366, %v398
    %v415 = vsel %vm383, %v367, %v399
    %v416 = vsel %vm384, %v368, %v400
    %v417 = vsel %vm385, %v369, %v401
    %v418 = vsel %vm386, %v370, %v402
    %v419 = vsel %vm387, %v371, %v403
    %v420 = vsel %vm388, %v372, %v404
    %v421 = vsel %vm389, %v373, %v405
    %v422 = vsel %vm390, %v374, %v406
    %v423 = vsel %vm391, %v375, %v407
    %v424 = vsel %vm392, %v376, %v408
    %v425 = vsel %vm393, %v377, %v409
    %v426 = vsel %vm394, %v378, %v410
    %v427 = vsel %vm395, %v379, %v411
    %v428 = vadd.f32 %v412, %v60
    %v429 = vadd.f32 %v413, %v61
    %v430 = vadd.f32 %v414, %v62
    %v431 = vadd.f32 %v415, %v63
    %v432 = vadd.f32 %v416, %v64
    %v433 = vadd.f32 %v417, %v65
    %v434 = vadd.f32 %v418, %v66
    %v435 = vadd.f32 %v419, %v67
    %v436 = vadd.f32 %v420, %v68
    %v437 = vadd.f32 %v421, %v69
    %v438 = vadd.f32 %v422, %v70
    %v439 = vadd.f32 %v423, %v71
    %v440 = vadd.f32 %v424, %v72
    %v441 = vadd.f32 %v425, %v73
    %v442 = vadd.f32 %v426, %v74
    %v443 = vadd.f32 %v427, %v75
    %v444 = vmul.f32 %v412, 2.0
    %v445 = vmul.f32 %v413, 2.0
    %v446 = vmul.f32 %v414, 2.0
    %v447 = vmul.f32 %v415, 2.0
    %v448 = vmul.f32 %v416, 2.0
    %v449 = vmul.f32 %v417, 2.0
    %v450 = vmul.f32 %v418, 2.0
    %v451 = vmul.f32 %v419, 2.0
    %v452 = vmul.f32 %v420, 2.0
    %v453 = vmul.f32 %v421, 2.0
    %v454 = vmul.f32 %v422, 2.0
    %v455 = vmul.f32 %v423, 2.0
    %v456 = vmul.f32 %v424, 2.0
    %v457 = vmul.f32 %v425, 2.0
    %v458 = vmul.f32 %v426, 2.0
    %v459 = vmul.f32 %v427, 2.0
    %v460 = vmul.f32 %v444, %v60
    %v461 = vmul.f32 %v445, %v61
    %v462 = vmul.f32 %v446, %v62
    %v463 = vmul.f32 %v447, %v63
    %v464 = vmul.f32 %v448, %v64
    %v465 = vmul.f32 %v449, %v65
    %v466 = vmul.f32 %v450, %v66
    %v467 = vmul.f32 %v451, %v67
    %v468 = vmul.f32 %v452, %v68
    %v469 = vmul.f32 %v453, %v69
    %v470 = vmul.f32 %v454, %v70
    %v471 = vmul.f32 %v455, %v71
    %v472 = vmul.f32 %v456, %v72
    %v473 = vmul.f32 %v457, %v73
    %v474 = vmul.f32 %v458, %v74
    %v475 = vmul.f32 %v459, %v75
    %v476 = vsub.f32 %v428, %v460
    %v477 = vsub.f32 %v429, %v461
    %v478 = vsub.f32 %v430, %v462
    %v479 = vsub.f32 %v431, %v463
    %v480 = vsub.f32 %v432, %v464
    %v481 = vsub.f32 %v433, %v465
    %v482 = vsub.f32 %v434, %v466
    %v483 = vsub.f32 %v435, %v467
    %v484 = vsub.f32 %v436, %v468
    %v485 = vsub.f32 %v437, %v469
    %v486 = vsub.f32 %v438, %v470
    %v487 = vsub.f32 %v439, %v471
    %v488 = vsub.f32 %v440, %v472
    %v489 = vsub.f32 %v441, %v473
    %v490 = vsub.f32 %v442, %v474
    %v491 = vsub.f32 %v443, %v475
    %v492 = vmax.f32 %v476, 0.0
    %v493 = vmax.f32 %v477, 0.0
    %v494 = vmax.f32 %v478, 0.0
    %v495 = vmax.f32 %v479, 0.0
    %v496 = vmax.f32 %v480, 0.0
    %v497 = vmax.f32 %v481, 0.0
    %v498 = vmax.f32 %v482, 0.0
    %v499 = vmax.f32 %v483, 0.0
    %v500 = vmax.f32 %v484, 0.0
    %v501 = vmax.f32 %v485, 0.0
    %v502 = vmax.f32 %v486, 0.0
    %v503 = vmax.f32 %v487, 0.0
    %v504 = vmax.f32 %v488, 0.0
    %v505 = vmax.f32 %v489, 0.0
    %v506 = vmax.f32 %v490, 0.0
    %v507 = vmax.f32 %v491, 0.0
    %v508 = vmul.f32 %v492, %v492
    %v509 = vmul.f32 %v493, %v493
    %v510 = vmul.f32 %v494, %v494
    %v511 = vmul.f32 %v495, %v495
    %v512 = vmul.f32 %v496, %v496
    %v513 = vmul.f32 %v497, %v497
    %v514 = vmul.f32 %v498, %v498
    %v515 = vmul.f32 %v499, %v499
    %v516 = vmul.f32 %v500, %v500
    %v517 = vmul.f32 %v501, %v501
    %v518 = vmul.f32 %v502, %v502
    %v519 = vmul.f32 %v503, %v503
    %v520 = vmul.f32 %v504, %v504
    %v521 = vmul.f32 %v505, %v505
    %v522 = vmul.f32 %v506, %v506
    %v523 = vmul.f32 %v507, %v507
    %v524 = vmul.f32 %v508, 0.25
    %v525 = vmul.f32 %v509, 0.25
    %v526 = vmul.f32 %v510, 0.25
    %v527 = vmul.f32 %v511, 0.25
    %v528 = vmul.f32 %v512, 0.25
    %v529 = vmul.f32 %v513, 0.25
    %v530 = vmul.f32 %v514, 0.25
    %v531 = vmul.f32 %v515, 0.25
    %v532 = vmul.f32 %v516, 0.25
    %v533 = vmul.f32 %v517, 0.25
    %v534 = vmul.f32 %v518, 0.25
    %v535 = vmul.f32 %v519, 0.25
    %v536 = vmul.f32 %v520, 0.25
    %v537 = vmul.f32 %v521, 0.25
    %v538 = vmul.f32 %v522, 0.25
    %v539 = vmul.f32 %v523, 0.25
    %v540 = vmul.f32 %v332, %v524
    %v541 = vmul.f32 %v333, %v525
    %v542 = vmul.f32 %v334, %v526
    %v543 = vmul.f32 %v335, %v527
    %v544 = vmul.f32 %v336, %v528
    %v545 = vmul.f32 %v337, %v529
    %v546 = vmul.f32 %v338, %v530
    %v547 = vmul.f32 %v339, %v531
    %v548 = vmul.f32 %v340, %v532
    %v549 = vmul.f32 %v341, %v533
    %v550 = vmul.f32 %v342, %v534
    %v551 = vmul.f32 %v343, %v535
    %v552 = vmul.f32 %v344, %v536
    %v553 = vmul.f32 %v345, %v537
    %v554 = vmul.f32 %v346, %v538
    %v555 = vmul.f32 %v347, %v539
    %v556 = vadd.f32 %v540, %v542
    %v557 = vadd.f32 %v556, %v544
    %v558 = vadd.f32 %v557, %v546
    %v559 = vadd.f32 %v558, %v548
    %v560 = vadd.f32 %v559, %v550
    %v561 = vadd.f32 %v560, %v552
    %v562 = vadd.f32 %v561, %v554
    %v563 = vadd.f32 %v541, %v543
    %v564 = vadd.f32 %v563, %v545
    %v565 = vadd.f32 %v564, %v547
    %v566 = vadd.f32 %v565, %v549
    %v567 = vadd.f32 %v566, %v551
    %v568 = vadd.f32 %v567, %v553
    %v569 = vadd.f32 %v568, %v555
    %v570 = vrot.slane %v562, 4
    %vm571 = vcmask 1047556
    %v572 = vsel %vm571, 0.0, %v570
    %v574 = vunpack.c.l.s4 1983009808
    %v575 = vunpack.c.0.s8 %v574
    %v576 = vperm.slane %v562, %v575
    %v578 = vunpack.c.l.s4 1983009808
    %v579 = vunpack.c.0.s8 %v578
    %v580 = vperm.slane %v572, %v579
    %v581 = vrot.slane %v569, 4
    %v582 = vsel %vm571, 0.0, %v581
    %v584 = vunpack.c.l.s4 1983009808
    %v585 = vunpack.c.0.s8 %v584
    %v586 = vperm.slane %v569, %v585
    %v588 = vunpack.c.l.s4 1983009808
    %v589 = vunpack.c.0.s8 %v588
    %v590 = vperm.slane %v582, %v589
    %v591 = vrot.slane %v586, 4
    %v592 = vsel %vm571, %v591, %v576
    %v593 = vrot.slane %v576, 4
    %v594 = vsel %vm571, %v586, %v593
    %v596 = vunpack.c.l.s4 1934713408
    %v597 = vunpack.c.0.s8 %v596
    %v598 = vperm.slane %v592, %v597
    %v600 = vunpack.c.l.s4 1934713408
    %v601 = vunpack.c.0.s8 %v600
    %v602 = vperm.slane %v594, %v601
    %v603 = vrot.slane %v590, 4
    %v604 = vsel %vm571, %v603, %v580
    %v605 = vrot.slane %v580, 4
    %v606 = vsel %vm571, %v590, %v605
    %v608 = vunpack.c.l.s4 1934713408
    %v609 = vunpack.c.0.s8 %v608
    %v610 = vperm.slane %v604, %v609
    %v612 = vunpack.c.l.s4 1934713408
    %v613 = vunpack.c.0.s8 %v612
    %v614 = vperm.slane %v606, %v613
    %v615 = vrot.slane %v598, 4
    %v616 = vsel %vm571, 0.0, %v615
    %v617 = vrot.slane %v602, 4
    %v618 = vsel %vm571, 0.0, %v617
    %v619 = vrot.slane %v610, 4
    %v620 = vsel %vm571, 0.0, %v619
    %v621 = vrot.slane %v614, 4
    %v622 = vsel %vm571, 0.0, %v621
    %vm623 = vcmask 1041408
    %v624 = vsel %vm623, %v598, 0.0
    %v625 = vrot.slane %v624, 4
    %v626 = vadd.f32 %v624, %v625
    %v627 = vrot.slane %v626, 2
    %v628 = vadd.f32 %v626, %v627
    %v629 = vrot.slane %v628, 1
    %v630 = vadd.f32 %v628, %v629
    %v631 = vsel %vm623, %v616, 0.0
    %v632 = vrot.slane %v631, 4
    %v633 = vadd.f32 %v631, %v632
    %v634 = vrot.slane %v633, 2
    %v635 = vadd.f32 %v633, %v634
    %v636 = vrot.slane %v635, 1
    %v637 = vadd.f32 %v635, %v636
    %v638 = vsel %vm623, %v602, 0.0
    %v639 = vrot.slane %v638, 4
    %v640 = vadd.f32 %v638, %v639
    %v641 = vrot.slane %v640, 2
    %v642 = vadd.f32 %v640, %v641
    %v643 = vrot.slane %v642, 1
    %v644 = vadd.f32 %v642, %v643
    %v645 = vsel %vm623, %v618, 0.0
    %v646 = vrot.slane %v645, 4
    %v647 = vadd.f32 %v645, %v646
    %v648 = vrot.slane %v647, 2
    %v649 = vadd.f32 %v647, %v648
    %v650 = vrot.slane %v649, 1
    %v651 = vadd.f32 %v649, %v650
    %v652 = vsel %vm623, %v610, 0.0
    %v653 = vrot.slane %v652, 4
    %v654 = vadd.f32 %v652, %v653
    %v655 = vrot.slane %v654, 2
    %v656 = vadd.f32 %v654, %v655
    %v657 = vrot.slane %v656, 1
    %v658 = vadd.f32 %v656, %v657
    %v659 = vsel %vm623, %v620, 0.0
    %v660 = vrot.slane %v659, 4
    %v661 = vadd.f32 %v659, %v660
    %v662 = vrot.slane %v661, 2
    %v663 = vadd.f32 %v661, %v662
    %v664 = vrot.slane %v663, 1
    %v665 = vadd.f32 %v663, %v664
    %v666 = vsel %vm623, %v614, 0.0
    %v667 = vrot.slane %v666, 4
    %v668 = vadd.f32 %v666, %v667
    %v669 = vrot.slane %v668, 2
    %v670 = vadd.f32 %v668, %v669
    %v671 = vrot.slane %v670, 1
    %v672 = vadd.f32 %v670, %v671
    %v673 = vsel %vm623, %v622, 0.0
    %v674 = vrot.slane %v673, 4
    %v675 = vadd.f32 %v673, %v674
    %v676 = vrot.slane %v675, 2
    %v677 = vadd.f32 %v675, %v676
    %v678 = vrot.slane %v677, 1
    %v679 = vadd.f32 %v677, %v678
    %vm688 = vcmask 1041409
    %v689 = vsel %vm688, %v637, %v630
    %vm690 = vcmask 1042434
    %v691 = vsel %vm690, %v644, %v689
    %vm692 = vcmask 1043459
    %v693 = vsel %vm692, %v651, %v691
    %vm694 = vcmask 1044484
    %v695 = vsel %vm694, %v658, %v693
    %vm696 = vcmask 1045509
    %v697 = vsel %vm696, %v665, %v695
    %vm698 = vcmask 1046534
    %v699 = vsel %vm698, %v672, %v697
    %vm700 = vcmask 1047559
    %v701 = vsel %vm700, %v679, %v699
    %703 = vst [vmem:[#allocation7] sm:$0xff] %v701
    // Predicated region
    $region18: #{tpu_custom_call.1} parent=1 // pred_check
      _
    $region19: #{tpu_custom_call.1} parent=1 // pred_check_branch
      %705 = sbr.rel (0) target = $region21
    $region20: #{tpu_custom_call.1} parent=1 // pred_region
      %707 = vsyncadd [#allocation4], 0
      %s709 = sshll.u32 [#allocation7], 4
      %s710 = int_to_ptr.vmem [resolvable:$true] %s709
      %s711 = sshll.u32 %s2, 4
      %s712 = int_to_ptr.hbm [resolvable:$true] %s711
      %714 = dma.vmem_to_hbm [thread:$0]  %s710, 128, %s712, [#allocation4]
    $region21: #{tpu_custom_call.1} parent=1 // pred_fallthru
      _
    // Predicated region
    $region22: #{tpu_custom_call.1} parent=1 // pred_check
      _
    $region23: #{tpu_custom_call.1} parent=1 // pred_check_branch
      %716 = sbr.rel (0) target = $region25
    $region24: #{tpu_custom_call.1} parent=1 // pred_region
      %718 = dma.done [#allocation4], 128
    $region25: #{tpu_custom_call.1} parent=1 // pred_fallthru
      _
    %719 = vsyncpa [#allocation3], 1
    %720 = vsyncpa [#allocation6], 1
    %721 = vsyncpa [#allocation4], 1

</llo_original>
